<compile_context>
chip_gen: v6e
topology: v6e:2x2x1
jax: 0.10.0
libtpu: 0.0.40
codegen_flags: <defaults>
</compile_context>

<pallas_src>
import functools

import jax
import jax.numpy as jnp
from jax.experimental import pallas as pl
from jax.experimental.pallas import tpu as pltpu


def _hloss_kernel(x_ref, o_ref, *, total_rows: int):
    """One grid step: partial -sum(softmax*log_softmax) over a (tile, C) row block."""
    i = pl.program_id(0)
    tb = x_ref.shape[0]

    x = x_ref[...].astype(jnp.float32)                    # (tb, C)

    # Numerically stable per-row statistics (exp/log run on the EUP slot).
    m = jnp.max(x, axis=1, keepdims=True)                 # (tb, 1)
    z = x - m
    ez = jnp.exp(z)
    s1 = jnp.sum(ez, axis=1, keepdims=True)               # (tb, 1)
    s2 = jnp.sum(ez * z, axis=1, keepdims=True)           # (tb, 1)
    # Per-row entropy: -sum_j p_j * log p_j = log(s1) - s2 / s1  (per-row divide only)
    row_ent = jnp.log(s1) - s2 / s1                       # (tb, 1)

    # Mask padded tail rows of the last tile so they contribute exactly 0
    # (jnp.where is a select, so garbage/NaN in padded rows cannot propagate).
    row_ids = jax.lax.broadcasted_iota(jnp.int32, (tb, 1), 0) + i * tb
    row_ent = jnp.where(row_ids < total_rows, row_ent, 0.0)

    partial = jnp.sum(row_ent)                            # scalar partial for this tile
    # Lane-dense (1, 8, 128) output block; wrapper reads element [i, 0, 0].
    o_ref[...] = jnp.broadcast_to(partial, o_ref.shape).astype(o_ref.dtype)


def _pick_tile_rows(rows: int, row_bytes: int) -> int:
    """Largest row tile s.t. the double-buffered input stays <= ~24 MiB."""
    per_buffer_budget = 12 * 1024 * 1024
    max_rows = max(8, per_buffer_budget // max(1, row_bytes))
    tile = min(rows, max_rows, 2048)
    if tile >= rows:
        return rows                        # single block == full array dims (always valid)
    return max(8, (tile // 8) * 8)         # partial tiling: rows per tile multiple of 8


def hloss_pallas(x: jax.Array, *, tile_rows: int | None = None) -> jax.Array:
    """Entropy loss: -sum(softmax(x, dim=1) * log_softmax(x, dim=1)). Returns f32 scalar."""
    assert x.ndim >= 2, "HLoss needs >= 2 dims (softmax over dim=1)"
    C = x.shape[1]
    if x.ndim > 2:
        # softmax over dim=1 at every other index -> move class dim last, flatten rows.
        x2 = jnp.moveaxis(x, 1, -1).reshape(-1, C)
    else:
        x2 = x
    rows = x2.shape[0]

    # TODO(synk): vocab-scale C should tile over C with an online (running max /
    # running sum) formulation instead of requiring full rows in one block.
    if tile_rows is None:
        tile = _pick_tile_rows(rows, C * x2.dtype.itemsize)
    else:
        tile = rows if tile_rows >= rows else max(8, (tile_rows // 8) * 8)
    num_tiles = pl.cdiv(rows, tile)

    kernel = functools.partial(_hloss_kernel, total_rows=rows)
    partials = pl.pallas_call(
        kernel,
        out_shape=jax.ShapeDtypeStruct((num_tiles, 8, 128), jnp.float32),
        grid_spec=pltpu.PrefetchScalarGridSpec(
            num_scalar_prefetch=0,
            grid=(num_tiles,),
            in_specs=[pl.BlockSpec((tile, C), lambda i: (i, 0))],
            out_specs=pl.BlockSpec((1, 8, 128), lambda i: (i, 0, 0)),
        ),
        compiler_params=pltpu.CompilerParams(
            # Independent per-tile outputs -> grid axis shards across v7x's 2 TCs.
            dimension_semantics=("parallel",),
            # Large tiles exceed the default scoped VMEM on v5e (16 MiB);
            # 40 MiB still leaves headroom inside v7x's 64 MiB physical VMEM.
            vmem_limit_bytes=40 * 1024 * 1024,
        ),
    )(x2)
    # Tiny final reduction (a few floats) in plain JAX.
    return jnp.sum(partials[:, 0, 0])


def hloss_ref(x: jax.Array) -> jax.Array:
    xf = x.astype(jnp.float32)
    p = jax.nn.softmax(xf, axis=1)
    logp = jax.nn.log_softmax(xf, axis=1)
    return -1.0 * jnp.sum(p * logp)


if __name__ == "__main__":
    key = jax.random.PRNGKey(0)
    k1, k2 = jax.random.split(key)

    # 2-D logits (typical HLoss usage): (batch, classes)
    x2d = jax.random.normal(k1, (16, 32), dtype=jnp.float32)
    out2d = jax.block_until_ready(hloss_pallas(x2d))
    ref2d = hloss_ref(x2d)
    assert jnp.allclose(out2d, ref2d, rtol=1e-5, atol=1e-5), (out2d, ref2d)

    # Non-divisible batch with a forced small tile (exercises padded-tail masking).
    x_odd = jax.random.normal(k2, (13, 32), dtype=jnp.float32)
    out_odd = jax.block_until_ready(hloss_pallas(x_odd, tile_rows=8))
    ref_odd = hloss_ref(x_odd)
    assert jnp.allclose(out_odd, ref_odd, rtol=1e-5, atol=1e-5), (out_odd, ref_odd)

    # 4-D input: softmax over channel dim=1, matching F.softmax(x, dim=1).
    x4d = jax.random.normal(key, (2, 4, 8, 8), dtype=jnp.float32)
    out4d = jax.block_until_ready(hloss_pallas(x4d))
    ref4d = hloss_ref(x4d)
    assert jnp.allclose(out4d, ref4d, rtol=1e-5, atol=1e-5), (out4d, ref4d)

    print("KERNEL_OK")
</pallas_src>

<mosaic_0001>
module attributes {stable_mosaic.version = 11 : i64} {
  func.func @_hloss_kernel(%arg0: i32, %arg1: memref<16x32xf32, #tpu.memory_space<vmem>>, %arg2: memref<1x8x128xf32, #tpu.memory_space<vmem>>) attributes {dimension_semantics = [#tpu.dimension_semantics<parallel>], iteration_bounds = array<i64: 1>, scalar_prefetch = 0 : i64, scratch_operands = 0 : i64, tpu.core_type = #tpu.core_type<tc>, window_params = [{transform_indices = @transform_0, window_bounds = array<i64: 16, 32>}, {transform_indices = @transform_1, window_bounds = array<i64: 1, 8, 128>}]} {
    %c0 = arith.constant 0 : index
    %c0_0 = arith.constant 0 : index
    %0 = vector.load %arg1[%c0, %c0_0] : memref<16x32xf32, #tpu.memory_space<vmem>>, vector<16x32xf32>
    %cst = arith.constant dense<0xFF800000> : vector<16xf32>
    %1 = vector.multi_reduction <maximumf>, %0, %cst [1] : vector<16x32xf32> to vector<16xf32>
    %2 = vector.shape_cast %1 : vector<16xf32> to vector<16x1xf32>
    %3 = vector.broadcast %2 : vector<16x1xf32> to vector<16x32xf32>
    %4 = arith.subf %0, %3 : vector<16x32xf32>
    %5 = math.exp %4 : vector<16x32xf32>
    %cst_1 = arith.constant dense<0.000000e+00> : vector<16xf32>
    %6 = vector.multi_reduction <add>, %5, %cst_1 [1] : vector<16x32xf32> to vector<16xf32>
    %7 = vector.shape_cast %6 : vector<16xf32> to vector<16x1xf32>
    %8 = arith.mulf %5, %4 : vector<16x32xf32>
    %cst_2 = arith.constant dense<0.000000e+00> : vector<16xf32>
    %9 = vector.multi_reduction <add>, %8, %cst_2 [1] : vector<16x32xf32> to vector<16xf32>
    %10 = vector.shape_cast %9 : vector<16xf32> to vector<16x1xf32>
    %11 = math.log %7 : vector<16x1xf32>
    %12 = arith.divf %10, %7 : vector<16x1xf32>
    %13 = arith.subf %11, %12 : vector<16x1xf32>
    %14 = tpu.iota {dimensions = array<i32: 0>} : vector<16x1xi32>
    %c16_i32 = arith.constant 16 : i32
    %15 = arith.muli %arg0, %c16_i32 : i32
    %16 = vector.broadcast %15 : i32 to vector<16x1xi32>
    %17 = arith.addi %14, %16 : vector<16x1xi32>
    %c16_i32_3 = arith.constant 16 : i32
    %18 = vector.broadcast %c16_i32_3 : i32 to vector<16x1xi32>
    %19 = arith.cmpi slt, %17, %18 : vector<16x1xi32>
    %cst_4 = arith.constant 0.000000e+00 : f32
    %20 = vector.broadcast %cst_4 : f32 to vector<16x1xf32>
    %21 = arith.select %19, %13, %20 : vector<16x1xi1>, vector<16x1xf32>
    %22 = vector.shape_cast %21 : vector<16x1xf32> to vector<1x16x1xf32>
    %cst_5 = arith.constant dense<0.000000e+00> : vector<1xf32>
    %23 = vector.multi_reduction <add>, %22, %cst_5 [1, 2] : vector<1x16x1xf32> to vector<1xf32>
    %24 = vector.shape_cast %23 : vector<1xf32> to vector<1x1x1xf32>
    %25 = vector.extract %24[0, 0, 0] : f32 from vector<1x1x1xf32>
    %26 = vector.broadcast %25 : f32 to vector<1x8x128xf32>
    %c0_6 = arith.constant 0 : index
    %c0_7 = arith.constant 0 : index
    %c0_8 = arith.constant 0 : index
    %27 = vector.load %arg2[%c0_6, %c0_7, %c0_8] : memref<1x8x128xf32, #tpu.memory_space<vmem>>, vector<1x8x128xf32>
    tpu.vector_store %arg2[%c0_6, %c0_7, %c0_8], %26 {strides = array<i32>} : memref<1x8x128xf32, #tpu.memory_space<vmem>>, vector<1x8x128xf32>,
    return
  }
  func.func @transform_0(%arg0: i32) -> (i32, i32) {
    %c0_i32 = arith.constant 0 : i32
    %c0_i32_0 = arith.constant 0 : i32
    return %arg0, %c0_i32 : i32, i32
  }
  func.func @transform_1(%arg0: i32) -> (i32, i32, i32) {
    %c0_i32 = arith.constant 0 : i32
    %c0_i32_0 = arith.constant 0 : i32
    %c0_i32_1 = arith.constant 0 : i32
    return %arg0, %c0_i32, %c0_i32_0 : i32, i32, i32
  }
}

</mosaic_0001>

<llo_original>
// kernel: tpu_custom_call.1
$region0: #{tpu_custom_call.1}
  #allocation0 [shape = 'u32[]', space=smem, size = 0x4, offset = 0x4, fixed_abs, tag = 'smem constant byte address 0x4 - core index']
  #allocation1 [shape = 'u32[144,128]{1,0:T(1,128)}', space=vmem, size = 0x12000, scoped, tag = 'internal scratch']
  %s0 = inlined_call_operand.hbm [shape: f32[16,32], index: 0, kind: input, shape index: {}]
  %s1 = inlined_call_operand.hbm [shape: f32[1,8,128], index: 1, kind: output, shape index: {}]
  %s2 = sld [smem:[#allocation0]]
  $region18: #{tpu_custom_call.1} parent=0
    _
  %s4 = ssub.s32 1, %s2
  %s5 = scalar_select 0, %s4, %s2
  $region1: #{tpu_custom_call.1} parent=0
    #allocation2 [shape = 'u8[8192]{0}', space=vmem, size = 0x2000, scoped, tag = 'input window, operand 0, single buffered']
    #allocation3 [shape = 's32[1]{0}', space=sflag, size = 0x4, scoped, tag = 'scoped memory for tpu_custom_call.1']
    #allocation4 [shape = 's32[1]{0}', space=sflag, size = 0x4, scoped, tag = 'scoped memory for tpu_custom_call.1']
    #allocation5 [shape = 'u8[4096]{0}', space=vmem, size = 0x1000, scoped, tag = 'output window, operand 0, single buffered']
    %6 = vsyncpa [#allocation3], 0
    %7 = vsyncpa [#allocation4], 0
    // Predicated region
    $region2: #{tpu_custom_call.1} parent=1 // pred_check
      _
    $region3: #{tpu_custom_call.1} parent=1 // pred_check_branch
      %9 = sbr.rel (0) target = $region5
    $region4: #{tpu_custom_call.1} parent=1 // pred_region
      %s11 = ssub.s32 256, 256
      %12 = vsyncadd [#allocation3], %s11
      %s13 = sshll.u32 [#allocation2], 4
      %s14 = int_to_ptr.vmem [resolvable:$true] %s13
      %19 = dma.hbm_to_vmem [thread:$0]  %s0, 256, %s14, [#allocation3], 128, 128, 8
    $region5: #{tpu_custom_call.1} parent=1 // pred_fallthru
      _
    // Predicated region
    $region6: #{tpu_custom_call.1} parent=1 // pred_check
      _
    $region7: #{tpu_custom_call.1} parent=1 // pred_check_branch
      %21 = sbr.rel (0) target = $region9
    $region8: #{tpu_custom_call.1} parent=1 // pred_region
      %22 = dma.done [#allocation3], 256
    $region9: #{tpu_custom_call.1} parent=1 // pred_fallthru
      _
    %v23 = vld [vmem:[#allocation2] sm:$0xff]
    %v24 = vld [vmem:[#allocation2 + $0x8] sm:$0xff]
    %vm25 = vcmask 261120
    %v26 = vsel %vm25, %v23, -inf
    %27 = vmax.xlane.f32.xlu0 %v26
    %v28 = vpop.xlane.xlu0 %27
    %v29 = vsel %vm25, %v24, -inf
    %30 = vmax.xlane.f32.xlu0 %v29
    %v31 = vpop.xlane.xlu0 %30
    %v32 = vsub.f32 %v23, %v28
    %v33 = vsub.f32 %v24, %v31
    %v34 = vmul.f32 %v32, 1.442695
    %v35 = vpow.pop %v34
    %v36 = vmul.f32 %v33, 1.442695
    %v37 = vpow.pop %v36
    %v38 = vsel %vm25, %v35, 0.0
    %39 = vadd.xlane.f32.xlu0 %v38
    %v40 = vpop.xlane.xlu0 %39
    %v41 = vsel %vm25, %v37, 0.0
    %42 = vadd.xlane.f32.xlu0 %v41
    %v43 = vpop.xlane.xlu0 %42
    %v44 = vmul.f32 %v35, %v32
    %v45 = vmul.f32 %v37, %v33
    %v46 = vsel %vm25, %v44, 0.0
    %47 = vadd.xlane.f32.xlu0 %v46
    %v48 = vpop.xlane.xlu0 %47
    %v49 = vsel %vm25, %v45, 0.0
    %50 = vadd.xlane.f32.xlu0 %v49
    %v51 = vpop.xlane.xlu0 %50
    %v52 = vlog2.pop %v40
    %v53 = vmul.f32 %v52, 0.6931472
    %v54 = vlog2.pop %v43
    %v55 = vmul.f32 %v54, 0.6931472
    %v56 = vrcp.pop %v40
    %v57 = vmul.f32 %v48, %v56
    %v58 = vrcp.pop %v43
    %v59 = vmul.f32 %v51, %v58
    %v60 = vsub.f32 %v53, %v57
    %v61 = vsub.f32 %v55, %v59
    %v62 = vlaneseq
    %v63 = vshrl.u32 %v62, 7
    %v64 = vadd.s32 %v63, 8
    %s65 = smul.u32 0, 16
    %v66 = vstv %s65
    %v67 = vadd.s32 %v63, %v66
    %v68 = vadd.s32 %v64, %v66
    %vm69 = vcmp.lt.s32.totalorder %v67, 16
    %vm70 = vcmp.lt.s32.totalorder %v68, 16
    %v71 = vsel %vm69, %v60, 0.0
    %v72 = vsel %vm70, %v61, 0.0
    %vm73 = vcmask 7168
    %v74 = vsel %vm73, %v71, 0.0
    %v75 = vsel %vm73, %v72, 0.0
    %v76 = vadd.f32 %v74, %v75
    %77 = vadd.xlane.f32.xlu0 %v76
    %v78 = vpop.xlane.xlu0 %77
    %v79 = vrot.slane %v78, 4
    %v80 = vadd.f32 %v78, %v79
    %v81 = vrot.slane %v80, 2
    %v82 = vadd.f32 %v80, %v81
    %v83 = vrot.slane %v82, 1
    %v84 = vadd.f32 %v82, %v83
    %s85 = vtos %v84
    %v86 = vstv %s85
    %87 = vst [vmem:[#allocation5] sm:$0xff] %v86
    // Predicated region
    $region10: #{tpu_custom_call.1} parent=1 // pred_check
      _
    $region11: #{tpu_custom_call.1} parent=1 // pred_check_branch
      %89 = sbr.rel (0) target = $region13
    $region12: #{tpu_custom_call.1} parent=1 // pred_region
      %s91 = ssub.s32 128, 128
      %92 = vsyncadd [#allocation4], %s91
      %s94 = sshll.u32 [#allocation5], 4
      %s95 = int_to_ptr.vmem [resolvable:$true] %s94
      %97 = dma.vmem_to_hbm [thread:$0]  %s95, 128, %s1, [#allocation4]
    $region13: #{tpu_custom_call.1} parent=1 // pred_fallthru
      _
    // Predicated region
    $region14: #{tpu_custom_call.1} parent=1 // pred_check
      _
    $region15: #{tpu_custom_call.1} parent=1 // pred_check_branch
      %99 = sbr.rel (0) target = $region17
    $region16: #{tpu_custom_call.1} parent=1 // pred_region
      %100 = dma.done [#allocation4], 128
    $region17: #{tpu_custom_call.1} parent=1 // pred_fallthru
      _
    %101 = vsyncpa [#allocation3], 1
    %102 = vsyncpa [#allocation4], 1

</llo_original>
